<compile_context>
chip_gen: v6e
topology: v6e:2x2x1
jax: 0.10.0
libtpu: 0.0.40
codegen_flags: <defaults>
</compile_context>

<pallas_src>
import functools

import jax
import jax.numpy as jnp
from jax.experimental import pallas as pl
from jax.experimental.pallas import tpu as pltpu


def _round_up(x, m):
    return ((x + m - 1) // m) * m


def cpblock_kernel(x_ref, w1_ref, b1_ref, w2_ref, b2_ref, w3_ref, b3_ref,
                   o_ref, acc_ref, *, inv_s, true_s, needs_mask):
    s = pl.program_id(1)

    @pl.when(s == 0)
    def _init():
        acc_ref[...] = jnp.zeros_like(acc_ref)

    # Partial spatial sum for this chunk, accumulated in f32.
    x = x_ref[...].astype(jnp.float32)          # (b_tile, C, s_chunk)
    if needs_mask:
        # Edge spatial blocks are NOT zero-filled by Pallas: mask lanes >= S.
        s_chunk = x.shape[-1]
        col = jax.lax.broadcasted_iota(jnp.int32, x.shape, 2) + s * s_chunk
        x = jnp.where(col < true_s, x, 0.0)
    acc_ref[...] += jnp.sum(x, axis=-1)         # (b_tile, C)

    @pl.when(s == pl.num_programs(1) - 1)
    def _finalize():
        pooled = acc_ref[...] * inv_s           # global average pool
        h1 = jnp.dot(pooled, w1_ref[...],
                     preferred_element_type=jnp.float32) + b1_ref[...]
        h1 = jnp.maximum(h1, 0.0)
        h2 = jnp.dot(h1, w2_ref[...],
                     preferred_element_type=jnp.float32) + b2_ref[...]
        h2 = jnp.maximum(h2, 0.0)
        out = jnp.dot(h2, w3_ref[...],
                      preferred_element_type=jnp.float32) + b3_ref[...]
        o_ref[...] = out.astype(o_ref.dtype)


def cpblock_forward(x, params):
    """x: (B, C, H, W). params: weights stored as (in, out), biases (1, out)."""
    B, C, H, W = x.shape
    S = H * W
    f32 = jnp.float32
    x_itemsize = jnp.dtype(x.dtype).itemsize

    w1, b1 = params["w1"], params["b1"]
    w2, b2 = params["w2"], params["b2"]
    w3, b3 = params["w3"], params["b3"]
    h1_dim, h2_dim, out_dim = w1.shape[1], w2.shape[1], w3.shape[1]

    # Lane-dense padded feature dims (weights/biases only; these are tiny).
    h1_pad = _round_up(h1_dim, 128)
    h2_pad = _round_up(h2_dim, 128)
    out_pad = _round_up(out_dim, 128)     # lane-dense output store

    # x: contiguous reshape only — no pad, no dtype cast, no HBM copy.
    x3 = x.reshape(B, C, S)

    # Zero-pad weights/biases to lane-dense shapes (numerical no-op: padded
    # columns stay exactly 0 through bias + ReLU, padded rows see 0 inputs).
    w1p = jnp.pad(w1.astype(f32), ((0, 0), (0, h1_pad - h1_dim)))
    b1p = jnp.pad(b1.astype(f32).reshape(1, -1), ((0, 0), (0, h1_pad - h1_dim)))
    w2p = jnp.pad(w2.astype(f32), ((0, h1_pad - h1_dim), (0, h2_pad - h2_dim)))
    b2p = jnp.pad(b2.astype(f32).reshape(1, -1), ((0, 0), (0, h2_pad - h2_dim)))
    w3p = jnp.pad(w3.astype(f32), ((0, h2_pad - h2_dim), (0, out_pad - out_dim)))
    b3p = jnp.pad(b3.astype(f32).reshape(1, -1), ((0, 0), (0, out_pad - out_dim)))

    # Per-generation tile sizing from actual per-TC VMEM capacity.
    try:
        vmem_cap = int(pltpu.get_tpu_info().vmem_capacity_bytes)
    except Exception:
        vmem_cap = 64 * 1024 * 1024        # conservative (v7x per-TC)

    b_tile = min(B, 128)                   # <= B, so no batch padding needed

    w_bytes = sum(int(a.size) * 4 for a in (w1p, b1p, w2p, b2p, w3p, b3p))
    out_buf_bytes = 2 * b_tile * out_pad * 4
    acc_bytes = b_tile * _round_up(C, 128) * 4
    headroom = 2 << 20

    # Budget for ONE x buffer (x is double-buffered), from what remains after
    # resident weights (assume worst-case 2 weight buffers for the fallback).
    avail = vmem_cap - 2 * w_bytes - out_buf_bytes - acc_bytes - headroom
    x_buf_budget = max(avail // 2, 128 * 1024)
    row_bytes = max(b_tile * C * x_itemsize, 1)
    max_lanes = max(x_buf_budget // row_bytes, 128)
    if S <= max_lanes:
        s_chunk = S                        # single full-dim spatial block
    else:
        s_chunk = (max_lanes // 128) * 128 # 128-lane multiple, edge masked

    grid = (pl.cdiv(B, b_tile), pl.cdiv(S, s_chunk))
    needs_mask = (S % s_chunk) != 0

    x_tile_bytes = b_tile * C * s_chunk * x_itemsize
    needed = (2 * x_tile_bytes + 2 * w_bytes + out_buf_bytes + acc_bytes
              + headroom)
    vmem_limit = int(min(vmem_cap, max(needed, 16 << 20)))

    flops = int(2 * B * (C * h1_dim + h1_dim * h2_dim + h2_dim * out_dim)
                + B * C * S)
    bytes_accessed = int(B * C * S * x_itemsize + w_bytes + B * out_pad * 4)
    cost = pl.CostEstimate(flops=flops, transcendentals=0,
                           bytes_accessed=bytes_accessed)

    kernel = functools.partial(cpblock_kernel, inv_s=1.0 / float(S),
                               true_s=S, needs_mask=needs_mask)

    def make_call(single_buffer_weights):
        def wspec(shape):
            if single_buffer_weights:
                # Constant-index inputs never re-DMA -> one buffer is enough.
                return pl.BlockSpec(shape, lambda b, s: (0, 0),
                                    pipeline_mode=pl.Buffered(1))
            return pl.BlockSpec(shape, lambda b, s: (0, 0))

        grid_spec = pltpu.PrefetchScalarGridSpec(
            num_scalar_prefetch=0,
            grid=grid,
            in_specs=[
                # x: streamed (batch tile, all channels, spatial chunk).
                pl.BlockSpec((b_tile, C, s_chunk), lambda b, s: (b, 0, s)),
                # weights/biases: constant index_map -> DMA'd once, resident.
                wspec((C, h1_pad)), wspec((1, h1_pad)),
                wspec((h1_pad, h2_pad)), wspec((1, h2_pad)),
                wspec((h2_pad, out_pad)), wspec((1, out_pad)),
            ],
            out_specs=pl.BlockSpec((b_tile, out_pad), lambda b, s: (b, 0)),
            scratch_shapes=[pltpu.VMEM((b_tile, C), jnp.float32)],
        )
        return pl.pallas_call(
            kernel,
            out_shape=jax.ShapeDtypeStruct((B, out_pad), f32),
            grid_spec=grid_spec,
            compiler_params=pltpu.CompilerParams(
                dimension_semantics=("parallel", "arbitrary"),
                vmem_limit_bytes=vmem_limit,
            ),
            cost_estimate=cost,
        )

    args = (x3, w1p, b1p, w2p, b2p, w3p, b3p)
    try:
        out_padded = make_call(True)(*args)
    except Exception:
        # pipeline_mode=pl.Buffered(1) unsupported in this jax build; the
        # double-buffered-weights fallback is identical numerically.
        out_padded = make_call(False)(*args)

    return out_padded[:, :out_dim]


def init_params(key, in_channels, out_channels):
    """Deterministic init matching nn.Linear default U(-1/sqrt(fan_in), +).
    Weights are stored pre-transposed as (in_features, out_features)."""
    dims = [
        (in_channels, in_channels * 4),
        (in_channels * 4, in_channels * 2),
        (in_channels * 2, out_channels),
    ]
    params = {}
    for i, (fan_in, fan_out) in enumerate(dims, start=1):
        key, kw, kb = jax.random.split(key, 3)
        bound = 1.0 / (fan_in ** 0.5)
        params[f"w{i}"] = jax.random.uniform(
            kw, (fan_in, fan_out), jnp.float32, minval=-bound, maxval=bound)
        params[f"b{i}"] = jax.random.uniform(
            kb, (1, fan_out), jnp.float32, minval=-bound, maxval=bound)
    return params


def cpblock_reference(x, params):
    pooled = jnp.mean(x, axis=(-1, -2))
    h1 = jnp.maximum(pooled @ params["w1"] + params["b1"], 0.0)
    h2 = jnp.maximum(h1 @ params["w2"] + params["b2"], 0.0)
    return h2 @ params["w3"] + params["b3"]


if __name__ == "__main__":
    B, C, H, W = 2, 4, 16, 16
    out_channels = 8

    key = jax.random.PRNGKey(0)
    key, kx = jax.random.split(key)
    x = jax.random.normal(kx, (B, C, H, W), dtype=jnp.float32)

    params = init_params(key, C, out_channels)

    out = cpblock_forward(x, params)
    out = jax.block_until_ready(out)

    ref = cpblock_reference(x, params)
    assert out.shape == (B, out_channels)
    assert jnp.allclose(out, ref, atol=1e-4, rtol=1e-4), "mismatch vs reference"

    print("KERNEL_OK")
</pallas_src>

<mosaic_0001>
module attributes {stable_mosaic.version = 11 : i64} {
  func.func @cpblock_kernel(%arg0: i32, %arg1: i32, %arg2: memref<2x4x256xf32, #tpu.memory_space<vmem>>, %arg3: memref<4x128xf32, #tpu.memory_space<vmem>>, %arg4: memref<1x128xf32, #tpu.memory_space<vmem>>, %arg5: memref<128x128xf32, #tpu.memory_space<vmem>>, %arg6: memref<1x128xf32, #tpu.memory_space<vmem>>, %arg7: memref<128x128xf32, #tpu.memory_space<vmem>>, %arg8: memref<1x128xf32, #tpu.memory_space<vmem>>, %arg9: memref<2x128xf32, #tpu.memory_space<vmem>>, %arg10: memref<2x4xf32, #tpu.memory_space<vmem>>) attributes {dimension_semantics = [#tpu.dimension_semantics<parallel>, #tpu.dimension_semantics<arbitrary>], iteration_bounds = array<i64: 1, 1>, scalar_prefetch = 0 : i64, scratch_operands = 1 : i64, tpu.core_type = #tpu.core_type<tc>, window_params = [{transform_indices = @transform_0, window_bounds = array<i64: 2, 4, 256>}, {pipeline_mode = #tpu.pipeline_mode<synchronous>, transform_indices = @transform_1, window_bounds = array<i64: 4, 128>}, {pipeline_mode = #tpu.pipeline_mode<synchronous>, transform_indices = @transform_2, window_bounds = array<i64: 1, 128>}, {pipeline_mode = #tpu.pipeline_mode<synchronous>, transform_indices = @transform_3, window_bounds = array<i64: 128, 128>}, {pipeline_mode = #tpu.pipeline_mode<synchronous>, transform_indices = @transform_4, window_bounds = array<i64: 1, 128>}, {pipeline_mode = #tpu.pipeline_mode<synchronous>, transform_indices = @transform_5, window_bounds = array<i64: 128, 128>}, {pipeline_mode = #tpu.pipeline_mode<synchronous>, transform_indices = @transform_6, window_bounds = array<i64: 1, 128>}, {transform_indices = @transform_7, window_bounds = array<i64: 2, 128>}]} {
    %c0_i32 = arith.constant 0 : i32
    %0 = arith.cmpi eq, %arg1, %c0_i32 : i32
    %1 = arith.extui %0 : i1 to i32
    %c0_i32_0 = arith.constant 0 : i32
    %2 = arith.cmpi ne, %1, %c0_i32_0 : i32
    scf.if %2 {
      %cst_9 = arith.constant 0.000000e+00 : f32
      %11 = vector.broadcast %cst_9 : f32 to vector<2x4xf32>
      %c0_10 = arith.constant 0 : index
      %c0_11 = arith.constant 0 : index
      %12 = vector.load %arg10[%c0_10, %c0_11] : memref<2x4xf32, #tpu.memory_space<vmem>>, vector<2x4xf32>
      tpu.vector_store %arg10[%c0_10, %c0_11], %11 {strides = array<i32>} : memref<2x4xf32, #tpu.memory_space<vmem>>, vector<2x4xf32>,
    } else {
    }
    %c0 = arith.constant 0 : index
    %c0_1 = arith.constant 0 : index
    %c0_2 = arith.constant 0 : index
    %3 = vector.load %arg2[%c0, %c0_1, %c0_2] : memref<2x4x256xf32, #tpu.memory_space<vmem>>, vector<2x4x256xf32>
    %c0_3 = arith.constant 0 : index
    %c0_4 = arith.constant 0 : index
    %4 = vector.load %arg10[%c0_3, %c0_4] : memref<2x4xf32, #tpu.memory_space<vmem>>, vector<2x4xf32>
    %cst = arith.constant dense<0.000000e+00> : vector<2x4xf32>
    %5 = vector.multi_reduction <add>, %3, %cst [2] : vector<2x4x256xf32> to vector<2x4xf32>
    %6 = arith.addf %4, %5 : vector<2x4xf32>
    %c0_5 = arith.constant 0 : index
    %c0_6 = arith.constant 0 : index
    %7 = vector.load %arg10[%c0_5, %c0_6] : memref<2x4xf32, #tpu.memory_space<vmem>>, vector<2x4xf32>
    tpu.vector_store %arg10[%c0_5, %c0_6], %6 {strides = array<i32>} : memref<2x4xf32, #tpu.memory_space<vmem>>, vector<2x4xf32>,
    %c0_i32_7 = arith.constant 0 : i32
    %8 = arith.cmpi eq, %arg1, %c0_i32_7 : i32
    %9 = arith.extui %8 : i1 to i32
    %c0_i32_8 = arith.constant 0 : i32
    %10 = arith.cmpi ne, %9, %c0_i32_8 : i32
    scf.if %10 {
      %c0_9 = arith.constant 0 : index
      %c0_10 = arith.constant 0 : index
      %11 = vector.load %arg10[%c0_9, %c0_10] : memref<2x4xf32, #tpu.memory_space<vmem>>, vector<2x4xf32>
      %cst_11 = arith.constant 3.906250e-03 : f32
      %12 = vector.broadcast %cst_11 : f32 to vector<2x4xf32>
      %13 = arith.mulf %11, %12 : vector<2x4xf32>
      %c0_12 = arith.constant 0 : index
      %c0_13 = arith.constant 0 : index
      %14 = vector.load %arg3[%c0_12, %c0_13] : memref<4x128xf32, #tpu.memory_space<vmem>>, vector<4x128xf32>
      %cst_14 = arith.constant dense<0.000000e+00> : vector<2x128xf32>
      %15 = tpu.matmul %13, %14, %cst_14 {dimension_numbers = #tpu.dot_dimension_numbers<[1], [0], [0], [1], [0, 0, 1, 1], [], []>} : vector<2x4xf32>, vector<4x128xf32>, vector<2x128xf32> -> vector<2x128xf32>
      %c0_15 = arith.constant 0 : index
      %c0_16 = arith.constant 0 : index
      %16 = vector.load %arg4[%c0_15, %c0_16] : memref<1x128xf32, #tpu.memory_space<vmem>>, vector<1x128xf32>
      %17 = vector.broadcast %16 : vector<1x128xf32> to vector<2x128xf32>
      %18 = arith.addf %15, %17 : vector<2x128xf32>
      %cst_17 = arith.constant 0.000000e+00 : f32
      %19 = vector.broadcast %cst_17 : f32 to vector<2x128xf32>
      %20 = arith.maximumf %18, %19 : vector<2x128xf32>
      %c0_18 = arith.constant 0 : index
      %c0_19 = arith.constant 0 : index
      %21 = vector.load %arg5[%c0_18, %c0_19] : memref<128x128xf32, #tpu.memory_space<vmem>>, vector<128x128xf32>
      %cst_20 = arith.constant dense<0.000000e+00> : vector<2x128xf32>
      %22 = tpu.matmul %20, %21, %cst_20 {dimension_numbers = #tpu.dot_dimension_numbers<[1], [0], [0], [1], [0, 0, 1, 1], [], []>} : vector<2x128xf32>, vector<128x128xf32>, vector<2x128xf32> -> vector<2x128xf32>
      %c0_21 = arith.constant 0 : index
      %c0_22 = arith.constant 0 : index
      %23 = vector.load %arg6[%c0_21, %c0_22] : memref<1x128xf32, #tpu.memory_space<vmem>>, vector<1x128xf32>
      %24 = vector.broadcast %23 : vector<1x128xf32> to vector<2x128xf32>
      %25 = arith.addf %22, %24 : vector<2x128xf32>
      %cst_23 = arith.constant 0.000000e+00 : f32
      %26 = vector.broadcast %cst_23 : f32 to vector<2x128xf32>
      %27 = arith.maximumf %25, %26 : vector<2x128xf32>
      %c0_24 = arith.constant 0 : index
      %c0_25 = arith.constant 0 : index
      %28 = vector.load %arg7[%c0_24, %c0_25] : memref<128x128xf32, #tpu.memory_space<vmem>>, vector<128x128xf32>
      %cst_26 = arith.constant dense<0.000000e+00> : vector<2x128xf32>
      %29 = tpu.matmul %27, %28, %cst_26 {dimension_numbers = #tpu.dot_dimension_numbers<[1], [0], [0], [1], [0, 0, 1, 1], [], []>} : vector<2x128xf32>, vector<128x128xf32>, vector<2x128xf32> -> vector<2x128xf32>
      %c0_27 = arith.constant 0 : index
      %c0_28 = arith.constant 0 : index
      %30 = vector.load %arg8[%c0_27, %c0_28] : memref<1x128xf32, #tpu.memory_space<vmem>>, vector<1x128xf32>
      %31 = vector.broadcast %30 : vector<1x128xf32> to vector<2x128xf32>
      %32 = arith.addf %29, %31 : vector<2x128xf32>
      %c0_29 = arith.constant 0 : index
      %c0_30 = arith.constant 0 : index
      %33 = vector.load %arg9[%c0_29, %c0_30] : memref<2x128xf32, #tpu.memory_space<vmem>>, vector<2x128xf32>
      tpu.vector_store %arg9[%c0_29, %c0_30], %32 {strides = array<i32>} : memref<2x128xf32, #tpu.memory_space<vmem>>, vector<2x128xf32>,
    } else {
    }
    return
  }
  func.func @transform_0(%arg0: i32, %arg1: i32) -> (i32, i32, i32) {
    %c0_i32 = arith.constant 0 : i32
    %c0_i32_0 = arith.constant 0 : i32
    return %arg0, %c0_i32, %arg1 : i32, i32, i32
  }
  func.func @transform_1(%arg0: i32, %arg1: i32) -> (i32, i32) {
    %c0_i32 = arith.constant 0 : i32
    %c0_i32_0 = arith.constant 0 : i32
    %c0_i32_1 = arith.constant 0 : i32
    return %c0_i32, %c0_i32_0 : i32, i32
  }
  func.func @transform_2(%arg0: i32, %arg1: i32) -> (i32, i32) {
    %c0_i32 = arith.constant 0 : i32
    %c0_i32_0 = arith.constant 0 : i32
    %c0_i32_1 = arith.constant 0 : i32
    return %c0_i32, %c0_i32_0 : i32, i32
  }
  func.func @transform_3(%arg0: i32, %arg1: i32) -> (i32, i32) {
    %c0_i32 = arith.constant 0 : i32
    %c0_i32_0 = arith.constant 0 : i32
    %c0_i32_1 = arith.constant 0 : i32
    return %c0_i32, %c0_i32_0 : i32, i32
  }
  func.func @transform_4(%arg0: i32, %arg1: i32) -> (i32, i32) {
    %c0_i32 = arith.constant 0 : i32
    %c0_i32_0 = arith.constant 0 : i32
    %c0_i32_1 = arith.constant 0 : i32
    return %c0_i32, %c0_i32_0 : i32, i32
  }
  func.func @transform_5(%arg0: i32, %arg1: i32) -> (i32, i32) {
    %c0_i32 = arith.constant 0 : i32
    %c0_i32_0 = arith.constant 0 : i32
    %c0_i32_1 = arith.constant 0 : i32
    return %c0_i32, %c0_i32_0 : i32, i32
  }
  func.func @transform_6(%arg0: i32, %arg1: i32) -> (i32, i32) {
    %c0_i32 = arith.constant 0 : i32
    %c0_i32_0 = arith.constant 0 : i32
    %c0_i32_1 = arith.constant 0 : i32
    return %c0_i32, %c0_i32_0 : i32, i32
  }
  func.func @transform_7(%arg0: i32, %arg1: i32) -> (i32, i32) {
    %c0_i32 = arith.constant 0 : i32
    %c0_i32_0 = arith.constant 0 : i32
    return %arg0, %c0_i32 : i32, i32
  }
}

module attributes {stable_mosaic.version = 11 : i64} {
  func.func @cpblock_kernel(%arg0: i32, %arg1: i32, %arg2: memref<2x4x256xf32, #tpu.memory_space<vmem>>, %arg3: memref<4x128xf32, #tpu.memory_space<vmem>>, %arg4: memref<1x128xf32, #tpu.memory_space<vmem>>, %arg5: memref<128x128xf32, #tpu.memory_space<vmem>>, %arg6: memref<1x128xf32, #tpu.memory_space<vmem>>, %arg7: memref<128x128xf32, #tpu.memory_space<vmem>>, %arg8: memref<1x128xf32, #tpu.memory_space<vmem>>, %arg9: memref<2x128xf32, #tpu.memory_space<vmem>>, %arg10: memref<2x4xf32, #tpu.memory_space<vmem>>) attributes {dimension_semantics = [#tpu.dimension_semantics<parallel>, #tpu.dimension_semantics<arbitrary>], iteration_bounds = array<i64: 1, 1>, scalar_prefetch = 0 : i64, scratch_operands = 1 : i64, tpu.core_type = #tpu.core_type<tc>, window_params = [{transform_indices = @transform_0, window_bounds = array<i64: 2, 4, 256>}, {pipeline_mode = #tpu.pipeline_mode<synchronous>, transform_indices = @transform_1, window_bounds = array<i64: 4, 128>}, {pipeline_mode = #tpu.pipeline_mode<synchronous>, transform_indices = @transform_2, window_bounds = array<i64: 1, 128>}, {pipeline_mode = #tpu.pipeline_mode<synchronous>, transform_indices = @transform_3, window_bounds = array<i64: 128, 128>}, {pipeline_mode = #tpu.pipeline_mode<synchronous>, transform_indices = @transform_4, window_bounds = array<i64: 1, 128>}, {pipeline_mode = #tpu.pipeline_mode<synchronous>, transform_indices = @transform_5, window_bounds = array<i64: 128, 128>}, {pipeline_mode = #tpu.pipeline_mode<synchronous>, transform_indices = @transform_6, window_bounds = array<i64: 1, 128>}, {transform_indices = @transform_7, window_bounds = array<i64: 2, 128>}]} {
    %c0_i32 = arith.constant 0 : i32
    %0 = arith.cmpi eq, %arg1, %c0_i32 : i32
    %1 = arith.extui %0 : i1 to i32
    %c0_i32_0 = arith.constant 0 : i32
    %2 = arith.cmpi ne, %1, %c0_i32_0 : i32
    scf.if %2 {
      %cst_9 = arith.constant 0.000000e+00 : f32
      %11 = vector.broadcast %cst_9 : f32 to vector<2x4xf32>
      %c0_10 = arith.constant 0 : index
      %c0_11 = arith.constant 0 : index
      %12 = vector.load %arg10[%c0_10, %c0_11] : memref<2x4xf32, #tpu.memory_space<vmem>>, vector<2x4xf32>
      tpu.vector_store %arg10[%c0_10, %c0_11], %11 {strides = array<i32>} : memref<2x4xf32, #tpu.memory_space<vmem>>, vector<2x4xf32>,
    } else {
    }
    %c0 = arith.constant 0 : index
    %c0_1 = arith.constant 0 : index
    %c0_2 = arith.constant 0 : index
    %3 = vector.load %arg2[%c0, %c0_1, %c0_2] : memref<2x4x256xf32, #tpu.memory_space<vmem>>, vector<2x4x256xf32>
    %c0_3 = arith.constant 0 : index
    %c0_4 = arith.constant 0 : index
    %4 = vector.load %arg10[%c0_3, %c0_4] : memref<2x4xf32, #tpu.memory_space<vmem>>, vector<2x4xf32>
    %cst = arith.constant dense<0.000000e+00> : vector<2x4xf32>
    %5 = vector.multi_reduction <add>, %3, %cst [2] : vector<2x4x256xf32> to vector<2x4xf32>
    %6 = arith.addf %4, %5 : vector<2x4xf32>
    %c0_5 = arith.constant 0 : index
    %c0_6 = arith.constant 0 : index
    %7 = vector.load %arg10[%c0_5, %c0_6] : memref<2x4xf32, #tpu.memory_space<vmem>>, vector<2x4xf32>
    tpu.vector_store %arg10[%c0_5, %c0_6], %6 {strides = array<i32>} : memref<2x4xf32, #tpu.memory_space<vmem>>, vector<2x4xf32>,
    %c0_i32_7 = arith.constant 0 : i32
    %8 = arith.cmpi eq, %arg1, %c0_i32_7 : i32
    %9 = arith.extui %8 : i1 to i32
    %c0_i32_8 = arith.constant 0 : i32
    %10 = arith.cmpi ne, %9, %c0_i32_8 : i32
    scf.if %10 {
      %c0_9 = arith.constant 0 : index
      %c0_10 = arith.constant 0 : index
      %11 = vector.load %arg10[%c0_9, %c0_10] : memref<2x4xf32, #tpu.memory_space<vmem>>, vector<2x4xf32>
      %cst_11 = arith.constant 3.906250e-03 : f32
      %12 = vector.broadcast %cst_11 : f32 to vector<2x4xf32>
      %13 = arith.mulf %11, %12 : vector<2x4xf32>
      %c0_12 = arith.constant 0 : index
      %c0_13 = arith.constant 0 : index
      %14 = vector.load %arg3[%c0_12, %c0_13] : memref<4x128xf32, #tpu.memory_space<vmem>>, vector<4x128xf32>
      %cst_14 = arith.constant dense<0.000000e+00> : vector<2x128xf32>
      %15 = tpu.matmul %13, %14, %cst_14 {dimension_numbers = #tpu.dot_dimension_numbers<[1], [0], [0], [1], [0, 0, 1, 1], [], []>} : vector<2x4xf32>, vector<4x128xf32>, vector<2x128xf32> -> vector<2x128xf32>
      %c0_15 = arith.constant 0 : index
      %c0_16 = arith.constant 0 : index
      %16 = vector.load %arg4[%c0_15, %c0_16] : memref<1x128xf32, #tpu.memory_space<vmem>>, vector<1x128xf32>
      %17 = vector.broadcast %16 : vector<1x128xf32> to vector<2x128xf32>
      %18 = arith.addf %15, %17 : vector<2x128xf32>
      %cst_17 = arith.constant 0.000000e+00 : f32
      %19 = vector.broadcast %cst_17 : f32 to vector<2x128xf32>
      %20 = arith.maximumf %18, %19 : vector<2x128xf32>
      %c0_18 = arith.constant 0 : index
      %c0_19 = arith.constant 0 : index
      %21 = vector.load %arg5[%c0_18, %c0_19] : memref<128x128xf32, #tpu.memory_space<vmem>>, vector<128x128xf32>
      %cst_20 = arith.constant dense<0.000000e+00> : vector<2x128xf32>
      %22 = tpu.matmul %20, %21, %cst_20 {dimension_numbers = #tpu.dot_dimension_numbers<[1], [0], [0], [1], [0, 0, 1, 1], [], []>} : vector<2x128xf32>, vector<128x128xf32>, vector<2x128xf32> -> vector<2x128xf32>
      %c0_21 = arith.constant 0 : index
      %c0_22 = arith.constant 0 : index
      %23 = vector.load %arg6[%c0_21, %c0_22] : memref<1x128xf32, #tpu.memory_space<vmem>>, vector<1x128xf32>
      %24 = vector.broadcast %23 : vector<1x128xf32> to vector<2x128xf32>
      %25 = arith.addf %22, %24 : vector<2x128xf32>
      %cst_23 = arith.constant 0.000000e+00 : f32
      %26 = vector.broadcast %cst_23 : f32 to vector<2x128xf32>
      %27 = arith.maximumf %25, %26 : vector<2x128xf32>
      %c0_24 = arith.constant 0 : index
      %c0_25 = arith.constant 0 : index
      %28 = vector.load %arg7[%c0_24, %c0_25] : memref<128x128xf32, #tpu.memory_space<vmem>>, vector<128x128xf32>
      %cst_26 = arith.constant dense<0.000000e+00> : vector<2x128xf32>
      %29 = tpu.matmul %27, %28, %cst_26 {dimension_numbers = #tpu.dot_dimension_numbers<[1], [0], [0], [1], [0, 0, 1, 1], [], []>} : vector<2x128xf32>, vector<128x128xf32>, vector<2x128xf32> -> vector<2x128xf32>
      %c0_27 = arith.constant 0 : index
      %c0_28 = arith.constant 0 : index
      %30 = vector.load %arg8[%c0_27, %c0_28] : memref<1x128xf32, #tpu.memory_space<vmem>>, vector<1x128xf32>
      %31 = vector.broadcast %30 : vector<1x128xf32> to vector<2x128xf32>
      %32 = arith.addf %29, %31 : vector<2x128xf32>
      %c0_29 = arith.constant 0 : index
      %c0_30 = arith.constant 0 : index
      %33 = vector.load %arg9[%c0_29, %c0_30] : memref<2x128xf32, #tpu.memory_space<vmem>>, vector<2x128xf32>
      tpu.vector_store %arg9[%c0_29, %c0_30], %32 {strides = array<i32>} : memref<2x128xf32, #tpu.memory_space<vmem>>, vector<2x128xf32>,
    } else {
    }
    return
  }
  func.func @transform_0(%arg0: i32, %arg1: i32) -> (i32, i32, i32) {
    %c0_i32 = arith.constant 0 : i32
    %c0_i32_0 = arith.constant 0 : i32
    return %arg0, %c0_i32, %arg1 : i32, i32, i32
  }
  func.func @transform_1(%arg0: i32, %arg1: i32) -> (i32, i32) {
    %c0_i32 = arith.constant 0 : i32
    %c0_i32_0 = arith.constant 0 : i32
    %c0_i32_1 = arith.constant 0 : i32
    return %c0_i32, %c0_i32_0 : i32, i32
  }
  func.func @transform_2(%arg0: i32, %arg1: i32) -> (i32, i32) {
    %c0_i32 = arith.constant 0 : i32
    %c0_i32_0 = arith.constant 0 : i32
    %c0_i32_1 = arith.constant 0 : i32
    return %c0_i32, %c0_i32_0 : i32, i32
  }
  func.func @transform_3(%arg0: i32, %arg1: i32) -> (i32, i32) {
    %c0_i32 = arith.constant 0 : i32
    %c0_i32_0 = arith.constant 0 : i32
    %c0_i32_1 = arith.constant 0 : i32
    return %c0_i32, %c0_i32_0 : i32, i32
  }
  func.func @transform_4(%arg0: i32, %arg1: i32) -> (i32, i32) {
    %c0_i32 = arith.constant 0 : i32
    %c0_i32_0 = arith.constant 0 : i32
    %c0_i32_1 = arith.constant 0 : i32
    return %c0_i32, %c0_i32_0 : i32, i32
  }
  func.func @transform_5(%arg0: i32, %arg1: i32) -> (i32, i32) {
    %c0_i32 = arith.constant 0 : i32
    %c0_i32_0 = arith.constant 0 : i32
    %c0_i32_1 = arith.constant 0 : i32
    return %c0_i32, %c0_i32_0 : i32, i32
  }
  func.func @transform_6(%arg0: i32, %arg1: i32) -> (i32, i32) {
    %c0_i32 = arith.constant 0 : i32
    %c0_i32_0 = arith.constant 0 : i32
    %c0_i32_1 = arith.constant 0 : i32
    return %c0_i32, %c0_i32_0 : i32, i32
  }
  func.func @transform_7(%arg0: i32, %arg1: i32) -> (i32, i32) {
    %c0_i32 = arith.constant 0 : i32
    %c0_i32_0 = arith.constant 0 : i32
    return %arg0, %c0_i32 : i32, i32
  }
}

</mosaic_0001>

<llo_original>
// kernel: tpu_custom_call.1
$region0: #{tpu_custom_call.1}
  #allocation0 [shape = 'u32[]', space=smem, size = 0x4, offset = 0x4, fixed_abs, tag = 'smem constant byte address 0x4 - core index']
  #allocation1 [shape = 'u32[144,128]{1,0:T(1,128)}', space=vmem, size = 0x12000, scoped, tag = 'internal scratch']
  #allocation2 [shape = 'f32[2,4]{1,0:T(2,128)}', space=vmem, size = 0x400, scoped, tag = 'scratch operand']
  %s0 = inlined_call_operand.hbm [shape: f32[2,4,256], index: 0, kind: input, shape index: {}]
  %s1 = inlined_call_operand.hbm [shape: f32[4,128], index: 1, kind: input, shape index: {}]
  %s2 = inlined_call_operand.vmem [shape: f32[1,128], index: 2, kind: input, shape index: {}]
  %s3 = inlined_call_operand.hbm [shape: f32[128,128], index: 3, kind: input, shape index: {}]
  %s4 = inlined_call_operand.vmem [shape: f32[1,128], index: 4, kind: input, shape index: {}]
  %s5 = inlined_call_operand.hbm [shape: f32[128,128], index: 5, kind: input, shape index: {}]
  %s6 = inlined_call_operand.vmem [shape: f32[1,128], index: 6, kind: input, shape index: {}]
  %s7 = inlined_call_operand.hbm [shape: f32[2,128], index: 7, kind: output, shape index: {}]
  %s8 = sld [smem:[#allocation0]]
  $region62: #{tpu_custom_call.1} parent=0
    _
  %s10 = ssub.s32 1, %s8
  %s11 = scalar_select 0, %s10, %s8
  $region1: #{tpu_custom_call.1} parent=0
    #allocation3 [shape = 'u8[8192]{0}', space=vmem, size = 0x2000, scoped, tag = 'input window, operand 0, single buffered']
    #allocation4 [shape = 's32[1]{0}', space=sflag, size = 0x4, scoped, tag = 'scoped memory for tpu_custom_call.1']
    #allocation5 [shape = 's32[1]{0}', space=sflag, size = 0x4, scoped, tag = 'scoped memory for tpu_custom_call.1']
    #allocation6 [shape = 'u8[2048]{0}', space=vmem, size = 0x800, scoped, tag = 'input window, operand 1, single buffered']
    #allocation7 [shape = 's32[1]{0}', space=sflag, size = 0x4, scoped, tag = 'scoped memory for tpu_custom_call.1']
    #allocation8 [shape = 'u8[65536]{0}', space=vmem, size = 0x10000, scoped, tag = 'input window, operand 3, single buffered']
    #allocation9 [shape = 'u8[65536]{0}', space=vmem, size = 0x10000, scoped, tag = 'input window, operand 5, single buffered']
    #allocation10 [shape = 's32[1]{0}', space=sflag, size = 0x4, scoped, tag = 'scoped memory for tpu_custom_call.1']
    #allocation11 [shape = 'u8[1024]{0}', space=vmem, size = 0x400, scoped, tag = 'output window, operand 0, single buffered']
    %12 = vsyncpa [#allocation4], 0
    %13 = vsyncpa [#allocation7], 0
    %14 = vsyncpa [#allocation10], 0
    %15 = vsyncpa [#allocation5], 0
    // Predicated region
    $region2: #{tpu_custom_call.1} parent=1 // pred_check
      _
    $region3: #{tpu_custom_call.1} parent=1 // pred_check_branch
      %17 = sbr.rel (0) target = $region5
    $region4: #{tpu_custom_call.1} parent=1 // pred_region
      %s19 = ssub.s32 256, 256
      %20 = vsyncadd [#allocation4], %s19
      %s21 = sshll.u32 [#allocation3], 4
      %s22 = int_to_ptr.vmem [resolvable:$true] %s21
      %27 = dma.hbm_to_vmem [thread:$0]  %s0, 256, %s22, [#allocation4], 128, 128, 8
    $region5: #{tpu_custom_call.1} parent=1 // pred_fallthru
      _
    // Predicated region
    $region6: #{tpu_custom_call.1} parent=1 // pred_check
      _
    $region7: #{tpu_custom_call.1} parent=1 // pred_check_branch
      %29 = sbr.rel (0) target = $region9
    $region8: #{tpu_custom_call.1} parent=1 // pred_region
      %s31 = ssub.s32 64, 64
      %32 = vsyncadd [#allocation7], %s31
      %s34 = sshll.u32 [#allocation6], 4
      %s35 = int_to_ptr.vmem [resolvable:$true] %s34
      %37 = dma.hbm_to_vmem [thread:$0]  %s1, 64, %s35, [#allocation7]
    $region9: #{tpu_custom_call.1} parent=1 // pred_fallthru
      _
    // Predicated region
    $region10: #{tpu_custom_call.1} parent=1 // pred_check
      _
    $region11: #{tpu_custom_call.1} parent=1 // pred_check_branch
      %39 = sbr.rel (0) target = $region13
    $region12: #{tpu_custom_call.1} parent=1 // pred_region
      _
    $region13: #{tpu_custom_call.1} parent=1 // pred_fallthru
      _
    // Predicated region
    $region14: #{tpu_custom_call.1} parent=1 // pred_check
      _
    $region15: #{tpu_custom_call.1} parent=1 // pred_check_branch
      %41 = sbr.rel (0) target = $region17
    $region16: #{tpu_custom_call.1} parent=1 // pred_region
      %s43 = ssub.s32 2048, 2048
      %44 = vsyncadd [#allocation7], %s43
      %s45 = sshll.u32 [#allocation8], 4
      %s46 = int_to_ptr.vmem [resolvable:$true] %s45
      %51 = dma.hbm_to_vmem [thread:$0]  %s3, 2048, %s46, [#allocation7], 128, 128, 8
    $region17: #{tpu_custom_call.1} parent=1 // pred_fallthru
      _
    // Predicated region
    $region18: #{tpu_custom_call.1} parent=1 // pred_check
      _
    $region19: #{tpu_custom_call.1} parent=1 // pred_check_branch
      %53 = sbr.rel (0) target = $region21
    $region20: #{tpu_custom_call.1} parent=1 // pred_region
      _
    $region21: #{tpu_custom_call.1} parent=1 // pred_fallthru
      _
    // Predicated region
    $region22: #{tpu_custom_call.1} parent=1 // pred_check
      _
    $region23: #{tpu_custom_call.1} parent=1 // pred_check_branch
      %55 = sbr.rel (0) target = $region25
    $region24: #{tpu_custom_call.1} parent=1 // pred_region
      %s57 = ssub.s32 2048, 2048
      %58 = vsyncadd [#allocation10], %s57
      %s59 = sshll.u32 [#allocation9], 4
      %s60 = int_to_ptr.vmem [resolvable:$true] %s59
      %65 = dma.hbm_to_vmem [thread:$0]  %s5, 2048, %s60, [#allocation10], 128, 128, 8
    $region25: #{tpu_custom_call.1} parent=1 // pred_fallthru
      _
    // Predicated region
    $region26: #{tpu_custom_call.1} parent=1 // pred_check
      _
    $region27: #{tpu_custom_call.1} parent=1 // pred_check_branch
      %67 = sbr.rel (0) target = $region29
    $region28: #{tpu_custom_call.1} parent=1 // pred_region
      _
    $region29: #{tpu_custom_call.1} parent=1 // pred_fallthru
      _
    // Predicated region
    $region30: #{tpu_custom_call.1} parent=1 // pred_check
      _
    $region31: #{tpu_custom_call.1} parent=1 // pred_check_branch
      %69 = sbr.rel (0) target = $region33
    $region32: #{tpu_custom_call.1} parent=1 // pred_region
      %70 = dma.done [#allocation4], 256
    $region33: #{tpu_custom_call.1} parent=1 // pred_fallthru
      _
    // Predicated region
    $region34: #{tpu_custom_call.1} parent=1 // pred_check
      _
    $region35: #{tpu_custom_call.1} parent=1 // pred_check_branch
      %72 = sbr.rel (0) target = $region37
    $region36: #{tpu_custom_call.1} parent=1 // pred_region
      %73 = dma.done [#allocation7], 64
    $region37: #{tpu_custom_call.1} parent=1 // pred_fallthru
      _
    // Predicated region
    $region38: #{tpu_custom_call.1} parent=1 // pred_check
      _
    $region39: #{tpu_custom_call.1} parent=1 // pred_check_branch
      %75 = sbr.rel (0) target = $region41
    $region40: #{tpu_custom_call.1} parent=1 // pred_region
      %76 = dma.done [#allocation7], 2048
    $region41: #{tpu_custom_call.1} parent=1 // pred_fallthru
      _
    // Predicated region
    $region42: #{tpu_custom_call.1} parent=1 // pred_check
      _
    $region43: #{tpu_custom_call.1} parent=1 // pred_check_branch
      %78 = sbr.rel (0) target = $region45
    $region44: #{tpu_custom_call.1} parent=1 // pred_region
      %79 = dma.done [#allocation10], 2048
    $region45: #{tpu_custom_call.1} parent=1 // pred_fallthru
      _
    %p80 = scmp.eq.s32.totalorder 0, 0
    // Predicated region
    $region46: #{tpu_custom_call.1} parent=1 // pred_check
      %p81 = pneg %p80
    $region47: #{tpu_custom_call.1} parent=1 // pred_check_branch
      %83 = sbr.rel (%p81) target = $region49
    $region48: #{tpu_custom_call.1} parent=1 // pred_region
      %vm84 = vcmask 25600
      %85 = vst.msk [vmem:[#allocation2] sm:$0x3] %vm84, 0.0
    $region49: #{tpu_custom_call.1} parent=1 // pred_fallthru
      _
    %v86 = vld [vmem:[#allocation3] sm:$0xff]
    %v87 = vld [vmem:[#allocation3 + $0x8] sm:$0xff]
    %v88 = vld [vmem:[#allocation2] sm:$0x3]
    %v91 = vcombine.high %v86, %v86
    %v92 = vcombine.high %v87, %v87
    %vm95 = vcmask 1043456
    %v96 = vsel %vm95, %v86, 0.0
    %v97 = vsel %vm95, %v91, 0.0
    %v98 = vadd.f32 %v96, %v97
    %99 = vadd.xlane.f32.xlu0 %v98
    %v100 = vpop.xlane.xlu0 %99
    %v101 = vsel %vm95, %v87, 0.0
    %v102 = vsel %vm95, %v92, 0.0
    %v103 = vadd.f32 %v101, %v102
    %104 = vadd.xlane.f32.xlu0 %v103
    %v105 = vpop.xlane.xlu0 %104
    %v108 = vlaneseq
    %v109 = vand.u32 %v108, 127
    %v110 = vlaneseq
    %v111 = vshrl.u32 %v110, 7
    %v112 = vsub.s32 %v109, %v111
    %v113 = vrot.slane %v100, %v112
    %v114 = vlaneseq
    %v115 = vshrl.u32 %v114, 7
    %v116 = vsub.s32 %v109, %v115
    %v117 = vrot.slane %v105, %v116
    %vm118 = vcmask 1041409
    %v119 = vsel %vm118, %v117, %v113
    %v121 = vadd.f32 %v88, %v119
    %vm122 = vcmask 25600
    %123 = vst.msk [vmem:[#allocation2] sm:$0x3] %vm122, %v121
    // Predicated region
    $region50: #{tpu_custom_call.1} parent=1 // pred_check
      %p124 = pneg %p80
    $region51: #{tpu_custom_call.1} parent=1 // pred_check_branch
      %126 = sbr.rel (%p124) target = $region53
    $region52: #{tpu_custom_call.1} parent=1 // pred_region
      %v127 = vld [vmem:[#allocation2] sm:$0x3]
      %v128 = vmul.f32 %v127, 0.00390625
      %v129 = vld [vmem:[#allocation6] sm:$0xf]
      %v130 = vld [vmem:[%s2] sm:$0x1]
      %v132 = vlaneseq
      %v133 = vshrl.u32 %v132, 7
      %v134 = vsub.s32 0, %v133
      %v135 = vrot.slane %v130, %v134
      %vm137 = vcmask 31744
      %v139 = vsel %vm137, %v128, 0
      %v142 = vsel %vm95, %v129, 0
      %144 = vmatprep.subr.mxu0 0.0
      %145 = vmatpush1.msra.mxu0 0.0
      %146 = vmatprep.subr.mxu0 0.0
      %147 = vmatpush1.msra.mxu0 0.0
      %148 = vmatprep.subr.mxu0 0.0
      %149 = vmatpush1.msra.mxu0 0.0
      %150 = vmatprep.subr.mxu0 0.0
      %151 = vmatpush1.msra.mxu0 0.0
      %152 = vmatprep.subr.mxu0 0.0
      %153 = vmatpush1.msra.mxu0 0.0
      %154 = vmatprep.subr.mxu0 0.0
      %155 = vmatpush1.msra.mxu0 0.0
      %156 = vmatprep.subr.mxu0 0.0
      %157 = vmatpush1.msra.mxu0 0.0
      %158 = vmatprep.subr.mxu0 0.0
      %159 = vmatpush1.msra.mxu0 0.0
      %160 = vmatprep.subr.mxu0 0.0
      %161 = vmatpush1.msra.mxu0 0.0
      %162 = vmatprep.subr.mxu0 0.0
      %163 = vmatpush1.msra.mxu0 0.0
      %164 = vmatprep.subr.mxu0 0.0
      %165 = vmatpush1.msra.mxu0 0.0
      %166 = vmatprep.subr.mxu0 0.0
      %167 = vmatpush1.msra.mxu0 0.0
      %168 = vmatprep.subr.mxu0 0.0
      %169 = vmatpush1.msra.mxu0 0.0
      %170 = vmatprep.subr.mxu0 0.0
      %171 = vmatpush1.msra.mxu0 0.0
      %172 = vmatprep.subr.mxu0 0.0
      %173 = vmatpush1.msra.mxu0 0.0
      %174 = vmatprep.subr.mxu0 0.0
      %175 = vmatpush1.msra.mxu0 %v142
      %176 = vmatprep.subr.mxu0 0.0
      %177 = vmatpush2.msra.mxu0 0.0
      %178 = vmatprep.subr.mxu0 0.0
      %179 = vmatpush2.msra.mxu0 0.0
      %180 = vmatprep.subr.mxu0 0.0
      %181 = vmatpush2.msra.mxu0 0.0
      %182 = vmatprep.subr.mxu0 0.0
      %183 = vmatpush2.msra.mxu0 0.0
      %184 = vmatprep.subr.mxu0 0.0
      %185 = vmatpush2.msra.mxu0 0.0
      %186 = vmatprep.subr.mxu0 0.0
      %187 = vmatpush2.msra.mxu0 0.0
      %188 = vmatprep.subr.mxu0 0.0
      %189 = vmatpush2.msra.mxu0 0.0
      %190 = vmatprep.subr.mxu0 0.0
      %191 = vmatpush2.msra.mxu0 0.0
      %192 = vmatprep.subr.mxu0 0.0
      %193 = vmatpush2.msra.mxu0 0.0
      %194 = vmatprep.subr.mxu0 0.0
      %195 = vmatpush2.msra.mxu0 0.0
      %196 = vmatprep.subr.mxu0 0.0
      %197 = vmatpush2.msra.mxu0 0.0
      %198 = vmatprep.subr.mxu0 0.0
      %199 = vmatpush2.msra.mxu0 0.0
      %200 = vmatprep.subr.mxu0 0.0
      %201 = vmatpush2.msra.mxu0 0.0
      %202 = vmatprep.subr.mxu0 0.0
      %203 = vmatpush2.msra.mxu0 0.0
      %204 = vmatprep.subr.mxu0 0.0
      %205 = vmatpush2.msra.mxu0 0.0
      %206 = vmatprep.subr.mxu0 0.0
      %207 = vmatpush2.msra.mxu0 0.0
      %208 = vmatprep.mubr.f32.mxu0 0.0
      %209 = vmatmul.mubr.f32.gmra.mxu0 %v139
      %v210 = vpop.f32.mrf.mxu0
      %v211 = vadd.f32 %v135, %v210
      %v212 = vpop.f32.mrf.mxu0
      %213 = vdwg.mxu0
      %v214 = vmax.f32 %v211, 0.0
      %v215 = vld [vmem:[#allocation8] sm:$0xff]
      %v216 = vld [vmem:[#allocation8 + $0x8] sm:$0xff]
      %v217 = vld [vmem:[#allocation8 + $0x10] sm:$0xff]
      %v218 = vld [vmem:[#allocation8 + $0x18] sm:$0xff]
      %v219 = vld [vmem:[#allocation8 + $0x20] sm:$0xff]
      %v220 = vld [vmem:[#allocation8 + $0x28] sm:$0xff]
      %v221 = vld [vmem:[#allocation8 + $0x30] sm:$0xff]
      %v222 = vld [vmem:[#allocation8 + $0x38] sm:$0xff]
      %v223 = vld [vmem:[#allocation8 + $0x40] sm:$0xff]
      %v224 = vld [vmem:[#allocation8 + $0x48] sm:$0xff]
      %v225 = vld [vmem:[#allocation8 + $0x50] sm:$0xff]
      %v226 = vld [vmem:[#allocation8 + $0x58] sm:$0xff]
      %v227 = vld [vmem:[#allocation8 + $0x60] sm:$0xff]
      %v228 = vld [vmem:[#allocation8 + $0x68] sm:$0xff]
      %v229 = vld [vmem:[#allocation8 + $0x70] sm:$0xff]
      %v230 = vld [vmem:[#allocation8 + $0x78] sm:$0xff]
      %v231 = vld [vmem:[%s4] sm:$0x1]
      %v233 = vlaneseq
      %v234 = vshrl.u32 %v233, 7
      %v235 = vsub.s32 0, %v234
      %v236 = vrot.slane %v231, %v235
      %238 = vmatprep.subr.mxu0 0.0
      %239 = vmatpush1.msra.mxu0 %v230
      %240 = vmatprep.subr.mxu0 0.0
      %241 = vmatpush1.msra.mxu0 %v229
      %242 = vmatprep.subr.mxu0 0.0
      %243 = vmatpush1.msra.mxu0 %v228
      %244 = vmatprep.subr.mxu0 0.0
      %245 = vmatpush1.msra.mxu0 %v227
      %246 = vmatprep.subr.mxu0 0.0
      %247 = vmatpush1.msra.mxu0 %v226
      %248 = vmatprep.subr.mxu0 0.0
      %249 = vmatpush1.msra.mxu0 %v225
      %250 = vmatprep.subr.mxu0 0.0
      %251 = vmatpush1.msra.mxu0 %v224
      %252 = vmatprep.subr.mxu0 0.0
      %253 = vmatpush1.msra.mxu0 %v223
      %254 = vmatprep.subr.mxu0 0.0
      %255 = vmatpush1.msra.mxu0 %v222
      %256 = vmatprep.subr.mxu0 0.0
      %257 = vmatpush1.msra.mxu0 %v221
      %258 = vmatprep.subr.mxu0 0.0
      %259 = vmatpush1.msra.mxu0 %v220
      %260 = vmatprep.subr.mxu0 0.0
      %261 = vmatpush1.msra.mxu0 %v219
      %262 = vmatprep.subr.mxu0 0.0
      %263 = vmatpush1.msra.mxu0 %v218
      %264 = vmatprep.subr.mxu0 0.0
      %265 = vmatpush1.msra.mxu0 %v217
      %266 = vmatprep.subr.mxu0 0.0
      %267 = vmatpush1.msra.mxu0 %v216
      %268 = vmatprep.subr.mxu0 0.0
      %269 = vmatpush1.msra.mxu0 %v215
      %270 = vmatprep.subr.mxu0 0.0
      %271 = vmatpush2.msra.mxu0 0.0
      %272 = vmatprep.subr.mxu0 0.0
      %273 = vmatpush2.msra.mxu0 0.0
      %274 = vmatprep.subr.mxu0 0.0
      %275 = vmatpush2.msra.mxu0 0.0
      %276 = vmatprep.subr.mxu0 0.0
      %277 = vmatpush2.msra.mxu0 0.0
      %278 = vmatprep.subr.mxu0 0.0
      %279 = vmatpush2.msra.mxu0 0.0
      %280 = vmatprep.subr.mxu0 0.0
      %281 = vmatpush2.msra.mxu0 0.0
      %282 = vmatprep.subr.mxu0 0.0
      %283 = vmatpush2.msra.mxu0 0.0
      %284 = vmatprep.subr.mxu0 0.0
      %285 = vmatpush2.msra.mxu0 0.0
      %286 = vmatprep.subr.mxu0 0.0
      %287 = vmatpush2.msra.mxu0 0.0
      %288 = vmatprep.subr.mxu0 0.0
      %289 = vmatpush2.msra.mxu0 0.0
      %290 = vmatprep.subr.mxu0 0.0
      %291 = vmatpush2.msra.mxu0 0.0
      %292 = vmatprep.subr.mxu0 0.0
      %293 = vmatpush2.msra.mxu0 0.0
      %294 = vmatprep.subr.mxu0 0.0
      %295 = vmatpush2.msra.mxu0 0.0
      %296 = vmatprep.subr.mxu0 0.0
      %297 = vmatpush2.msra.mxu0 0.0
      %298 = vmatprep.subr.mxu0 0.0
      %299 = vmatpush2.msra.mxu0 0.0
      %300 = vmatprep.subr.mxu0 0.0
      %301 = vmatpush2.msra.mxu0 0.0
      %302 = vmatprep.mubr.f32.mxu0 0.0
      %303 = vmatmul.mubr.f32.gmra.mxu0 %v214
      %v304 = vpop.f32.mrf.mxu0
      %v305 = vadd.f32 %v236, %v304
      %v306 = vpop.f32.mrf.mxu0
      %307 = vdwg.mxu0
      %v308 = vmax.f32 %v305, 0.0
      %v309 = vld [vmem:[#allocation9] sm:$0xff]
      %v310 = vld [vmem:[#allocation9 + $0x8] sm:$0xff]
      %v311 = vld [vmem:[#allocation9 + $0x10] sm:$0xff]
      %v312 = vld [vmem:[#allocation9 + $0x18] sm:$0xff]
      %v313 = vld [vmem:[#allocation9 + $0x20] sm:$0xff]
      %v314 = vld [vmem:[#allocation9 + $0x28] sm:$0xff]
      %v315 = vld [vmem:[#allocation9 + $0x30] sm:$0xff]
      %v316 = vld [vmem:[#allocation9 + $0x38] sm:$0xff]
      %v317 = vld [vmem:[#allocation9 + $0x40] sm:$0xff]
      %v318 = vld [vmem:[#allocation9 + $0x48] sm:$0xff]
      %v319 = vld [vmem:[#allocation9 + $0x50] sm:$0xff]
      %v320 = vld [vmem:[#allocation9 + $0x58] sm:$0xff]
      %v321 = vld [vmem:[#allocation9 + $0x60] sm:$0xff]
      %v322 = vld [vmem:[#allocation9 + $0x68] sm:$0xff]
      %v323 = vld [vmem:[#allocation9 + $0x70] sm:$0xff]
      %v324 = vld [vmem:[#allocation9 + $0x78] sm:$0xff]
      %v325 = vld [vmem:[%s6] sm:$0x1]
      %v327 = vlaneseq
      %v328 = vshrl.u32 %v327, 7
      %v329 = vsub.s32 0, %v328
      %v330 = vrot.slane %v325, %v329
      %332 = vmatprep.subr.mxu0 0.0
      %333 = vmatpush1.msra.mxu0 %v324
      %334 = vmatprep.subr.mxu0 0.0
      %335 = vmatpush1.msra.mxu0 %v323
      %336 = vmatprep.subr.mxu0 0.0
      %337 = vmatpush1.msra.mxu0 %v322
      %338 = vmatprep.subr.mxu0 0.0
      %339 = vmatpush1.msra.mxu0 %v321
      %340 = vmatprep.subr.mxu0 0.0
      %341 = vmatpush1.msra.mxu0 %v320
      %342 = vmatprep.subr.mxu0 0.0
      %343 = vmatpush1.msra.mxu0 %v319
      %344 = vmatprep.subr.mxu0 0.0
      %345 = vmatpush1.msra.mxu0 %v318
      %346 = vmatprep.subr.mxu0 0.0
      %347 = vmatpush1.msra.mxu0 %v317
      %348 = vmatprep.subr.mxu0 0.0
      %349 = vmatpush1.msra.mxu0 %v316
      %350 = vmatprep.subr.mxu0 0.0
      %351 = vmatpush1.msra.mxu0 %v315
      %352 = vmatprep.subr.mxu0 0.0
      %353 = vmatpush1.msra.mxu0 %v314
      %354 = vmatprep.subr.mxu0 0.0
      %355 = vmatpush1.msra.mxu0 %v313
      %356 = vmatprep.subr.mxu0 0.0
      %357 = vmatpush1.msra.mxu0 %v312
      %358 = vmatprep.subr.mxu0 0.0
      %359 = vmatpush1.msra.mxu0 %v311
      %360 = vmatprep.subr.mxu0 0.0
      %361 = vmatpush1.msra.mxu0 %v310
      %362 = vmatprep.subr.mxu0 0.0
      %363 = vmatpush1.msra.mxu0 %v309
      %364 = vmatprep.subr.mxu0 0.0
      %365 = vmatpush2.msra.mxu0 0.0
      %366 = vmatprep.subr.mxu0 0.0
      %367 = vmatpush2.msra.mxu0 0.0
      %368 = vmatprep.subr.mxu0 0.0
      %369 = vmatpush2.msra.mxu0 0.0
      %370 = vmatprep.subr.mxu0 0.0
      %371 = vmatpush2.msra.mxu0 0.0
      %372 = vmatprep.subr.mxu0 0.0
      %373 = vmatpush2.msra.mxu0 0.0
      %374 = vmatprep.subr.mxu0 0.0
      %375 = vmatpush2.msra.mxu0 0.0
      %376 = vmatprep.subr.mxu0 0.0
      %377 = vmatpush2.msra.mxu0 0.0
      %378 = vmatprep.subr.mxu0 0.0
      %379 = vmatpush2.msra.mxu0 0.0
      %380 = vmatprep.subr.mxu0 0.0
      %381 = vmatpush2.msra.mxu0 0.0
      %382 = vmatprep.subr.mxu0 0.0
      %383 = vmatpush2.msra.mxu0 0.0
      %384 = vmatprep.subr.mxu0 0.0
      %385 = vmatpush2.msra.mxu0 0.0
      %386 = vmatprep.subr.mxu0 0.0
      %387 = vmatpush2.msra.mxu0 0.0
      %388 = vmatprep.subr.mxu0 0.0
      %389 = vmatpush2.msra.mxu0 0.0
      %390 = vmatprep.subr.mxu0 0.0
      %391 = vmatpush2.msra.mxu0 0.0
      %392 = vmatprep.subr.mxu0 0.0
      %393 = vmatpush2.msra.mxu0 0.0
      %394 = vmatprep.subr.mxu0 0.0
      %395 = vmatpush2.msra.mxu0 0.0
      %396 = vmatprep.mubr.f32.mxu0 0.0
      %397 = vmatmul.mubr.f32.gmra.mxu0 %v308
      %v398 = vpop.f32.mrf.mxu0
      %v399 = vadd.f32 %v330, %v398
      %v400 = vpop.f32.mrf.mxu0
      %401 = vdwg.mxu0
      %402 = vst [vmem:[#allocation11] sm:$0x3] %v399
    $region53: #{tpu_custom_call.1} parent=1 // pred_fallthru
      _
    // Predicated region
    $region54: #{tpu_custom_call.1} parent=1 // pred_check
      _
    $region55: #{tpu_custom_call.1} parent=1 // pred_check_branch
      %404 = sbr.rel (0) target = $region57
    $region56: #{tpu_custom_call.1} parent=1 // pred_region
      %s406 = ssub.s32 32, 32
      %407 = vsyncadd [#allocation5], %s406
      %s409 = sshll.u32 [#allocation11], 4
      %s410 = int_to_ptr.vmem [resolvable:$true] %s409
      %412 = dma.vmem_to_hbm [thread:$0]  %s410, 32, %s7, [#allocation5]
    $region57: #{tpu_custom_call.1} parent=1 // pred_fallthru
      _
    // Predicated region
    $region58: #{tpu_custom_call.1} parent=1 // pred_check
      _
    $region59: #{tpu_custom_call.1} parent=1 // pred_check_branch
      %414 = sbr.rel (0) target = $region61
    $region60: #{tpu_custom_call.1} parent=1 // pred_region
      %415 = dma.done [#allocation5], 32
    $region61: #{tpu_custom_call.1} parent=1 // pred_fallthru
      _
    %416 = vsyncpa [#allocation4], 1
    %417 = vsyncpa [#allocation7], 1
    %418 = vsyncpa [#allocation10], 1
    %419 = vsyncpa [#allocation5], 1

// kernel: tpu_custom_call.1
$region0: #{tpu_custom_call.1}
  #allocation0 [shape = 'u32[]', space=smem, size = 0x4, offset = 0x4, fixed_abs, tag = 'smem constant byte address 0x4 - core index']
  #allocation1 [shape = 'u32[144,128]{1,0:T(1,128)}', space=vmem, size = 0x12000, scoped, tag = 'internal scratch']
  #allocation2 [shape = 'f32[2,4]{1,0:T(2,128)}', space=vmem, size = 0x400, scoped, tag = 'scratch operand']
  %s0 = inlined_call_operand.hbm [shape: f32[2,4,256], index: 0, kind: input, shape index: {}]
  %s1 = inlined_call_operand.hbm [shape: f32[4,128], index: 1, kind: input, shape index: {}]
  %s2 = inlined_call_operand.vmem [shape: f32[1,128], index: 2, kind: input, shape index: {}]
  %s3 = inlined_call_operand.hbm [shape: f32[128,128], index: 3, kind: input, shape index: {}]
  %s4 = inlined_call_operand.vmem [shape: f32[1,128], index: 4, kind: input, shape index: {}]
  %s5 = inlined_call_operand.hbm [shape: f32[128,128], index: 5, kind: input, shape index: {}]
  %s6 = inlined_call_operand.vmem [shape: f32[1,128], index: 6, kind: input, shape index: {}]
  %s7 = inlined_call_operand.hbm [shape: f32[2,128], index: 7, kind: output, shape index: {}]
  %s8 = sld [smem:[#allocation0]]
  $region62: #{tpu_custom_call.1} parent=0
    _
  %s10 = ssub.s32 1, %s8
  %s11 = scalar_select 0, %s10, %s8
  $region1: #{tpu_custom_call.1} parent=0
    #allocation3 [shape = 'u8[8192]{0}', space=vmem, size = 0x2000, scoped, tag = 'input window, operand 0, single buffered']
    #allocation4 [shape = 's32[1]{0}', space=sflag, size = 0x4, scoped, tag = 'scoped memory for tpu_custom_call.1']
    #allocation5 [shape = 's32[1]{0}', space=sflag, size = 0x4, scoped, tag = 'scoped memory for tpu_custom_call.1']
    #allocation6 [shape = 'u8[2048]{0}', space=vmem, size = 0x800, scoped, tag = 'input window, operand 1, single buffered']
    #allocation7 [shape = 's32[1]{0}', space=sflag, size = 0x4, scoped, tag = 'scoped memory for tpu_custom_call.1']
    #allocation8 [shape = 'u8[65536]{0}', space=vmem, size = 0x10000, scoped, tag = 'input window, operand 3, single buffered']
    #allocation9 [shape = 'u8[65536]{0}', space=vmem, size = 0x10000, scoped, tag = 'input window, operand 5, single buffered']
    #allocation10 [shape = 's32[1]{0}', space=sflag, size = 0x4, scoped, tag = 'scoped memory for tpu_custom_call.1']
    #allocation11 [shape = 'u8[1024]{0}', space=vmem, size = 0x400, scoped, tag = 'output window, operand 0, single buffered']
    %12 = vsyncpa [#allocation4], 0
    %13 = vsyncpa [#allocation7], 0
    %14 = vsyncpa [#allocation10], 0
    %15 = vsyncpa [#allocation5], 0
    // Predicated region
    $region2: #{tpu_custom_call.1} parent=1 // pred_check
      _
    $region3: #{tpu_custom_call.1} parent=1 // pred_check_branch
      %17 = sbr.rel (0) target = $region5
    $region4: #{tpu_custom_call.1} parent=1 // pred_region
      %s19 = ssub.s32 256, 256
      %20 = vsyncadd [#allocation4], %s19
      %s21 = sshll.u32 [#allocation3], 4
      %s22 = int_to_ptr.vmem [resolvable:$true] %s21
      %27 = dma.hbm_to_vmem [thread:$0]  %s0, 256, %s22, [#allocation4], 128, 128, 8
    $region5: #{tpu_custom_call.1} parent=1 // pred_fallthru
      _
    // Predicated region
    $region6: #{tpu_custom_call.1} parent=1 // pred_check
      _
    $region7: #{tpu_custom_call.1} parent=1 // pred_check_branch
      %29 = sbr.rel (0) target = $region9
    $region8: #{tpu_custom_call.1} parent=1 // pred_region
      %s31 = ssub.s32 64, 64
      %32 = vsyncadd [#allocation7], %s31
      %s34 = sshll.u32 [#allocation6], 4
      %s35 = int_to_ptr.vmem [resolvable:$true] %s34
      %37 = dma.hbm_to_vmem [thread:$0]  %s1, 64, %s35, [#allocation7]
    $region9: #{tpu_custom_call.1} parent=1 // pred_fallthru
      _
    // Predicated region
    $region10: #{tpu_custom_call.1} parent=1 // pred_check
      _
    $region11: #{tpu_custom_call.1} parent=1 // pred_check_branch
      %39 = sbr.rel (0) target = $region13
    $region12: #{tpu_custom_call.1} parent=1 // pred_region
      _
    $region13: #{tpu_custom_call.1} parent=1 // pred_fallthru
      _
    // Predicated region
    $region14: #{tpu_custom_call.1} parent=1 // pred_check
      _
    $region15: #{tpu_custom_call.1} parent=1 // pred_check_branch
      %41 = sbr.rel (0) target = $region17
    $region16: #{tpu_custom_call.1} parent=1 // pred_region
      %s43 = ssub.s32 2048, 2048
      %44 = vsyncadd [#allocation7], %s43
      %s45 = sshll.u32 [#allocation8], 4
      %s46 = int_to_ptr.vmem [resolvable:$true] %s45
      %51 = dma.hbm_to_vmem [thread:$0]  %s3, 2048, %s46, [#allocation7], 128, 128, 8
    $region17: #{tpu_custom_call.1} parent=1 // pred_fallthru
      _
    // Predicated region
    $region18: #{tpu_custom_call.1} parent=1 // pred_check
      _
    $region19: #{tpu_custom_call.1} parent=1 // pred_check_branch
      %53 = sbr.rel (0) target = $region21
    $region20: #{tpu_custom_call.1} parent=1 // pred_region
      _
    $region21: #{tpu_custom_call.1} parent=1 // pred_fallthru
      _
    // Predicated region
    $region22: #{tpu_custom_call.1} parent=1 // pred_check
      _
    $region23: #{tpu_custom_call.1} parent=1 // pred_check_branch
      %55 = sbr.rel (0) target = $region25
    $region24: #{tpu_custom_call.1} parent=1 // pred_region
      %s57 = ssub.s32 2048, 2048
      %58 = vsyncadd [#allocation10], %s57
      %s59 = sshll.u32 [#allocation9], 4
      %s60 = int_to_ptr.vmem [resolvable:$true] %s59
      %65 = dma.hbm_to_vmem [thread:$0]  %s5, 2048, %s60, [#allocation10], 128, 128, 8
    $region25: #{tpu_custom_call.1} parent=1 // pred_fallthru
      _
    // Predicated region
    $region26: #{tpu_custom_call.1} parent=1 // pred_check
      _
    $region27: #{tpu_custom_call.1} parent=1 // pred_check_branch
      %67 = sbr.rel (0) target = $region29
    $region28: #{tpu_custom_call.1} parent=1 // pred_region
      _
    $region29: #{tpu_custom_call.1} parent=1 // pred_fallthru
      _
    // Predicated region
    $region30: #{tpu_custom_call.1} parent=1 // pred_check
      _
    $region31: #{tpu_custom_call.1} parent=1 // pred_check_branch
      %69 = sbr.rel (0) target = $region33
    $region32: #{tpu_custom_call.1} parent=1 // pred_region
      %70 = dma.done [#allocation4], 256
    $region33: #{tpu_custom_call.1} parent=1 // pred_fallthru
      _
    // Predicated region
    $region34: #{tpu_custom_call.1} parent=1 // pred_check
      _
    $region35: #{tpu_custom_call.1} parent=1 // pred_check_branch
      %72 = sbr.rel (0) target = $region37
    $region36: #{tpu_custom_call.1} parent=1 // pred_region
      %73 = dma.done [#allocation7], 64
    $region37: #{tpu_custom_call.1} parent=1 // pred_fallthru
      _
    // Predicated region
    $region38: #{tpu_custom_call.1} parent=1 // pred_check
      _
    $region39: #{tpu_custom_call.1} parent=1 // pred_check_branch
      %75 = sbr.rel (0) target = $region41
    $region40: #{tpu_custom_call.1} parent=1 // pred_region
      %76 = dma.done [#allocation7], 2048
    $region41: #{tpu_custom_call.1} parent=1 // pred_fallthru
      _
    // Predicated region
    $region42: #{tpu_custom_call.1} parent=1 // pred_check
      _
    $region43: #{tpu_custom_call.1} parent=1 // pred_check_branch
      %78 = sbr.rel (0) target = $region45
    $region44: #{tpu_custom_call.1} parent=1 // pred_region
      %79 = dma.done [#allocation10], 2048
    $region45: #{tpu_custom_call.1} parent=1 // pred_fallthru
      _
    %p80 = scmp.eq.s32.totalorder 0, 0
    // Predicated region
    $region46: #{tpu_custom_call.1} parent=1 // pred_check
      %p81 = pneg %p80
    $region47: #{tpu_custom_call.1} parent=1 // pred_check_branch
      %83 = sbr.rel (%p81) target = $region49
    $region48: #{tpu_custom_call.1} parent=1 // pred_region
      %vm84 = vcmask 25600
      %85 = vst.msk [vmem:[#allocation2] sm:$0x3] %vm84, 0.0
    $region49: #{tpu_custom_call.1} parent=1 // pred_fallthru
      _
    %v86 = vld [vmem:[#allocation3] sm:$0xff]
    %v87 = vld [vmem:[#allocation3 + $0x8] sm:$0xff]
    %v88 = vld [vmem:[#allocation2] sm:$0x3]
    %v91 = vcombine.high %v86, %v86
    %v92 = vcombine.high %v87, %v87
    %vm95 = vcmask 1043456
    %v96 = vsel %vm95, %v86, 0.0
    %v97 = vsel %vm95, %v91, 0.0
    %v98 = vadd.f32 %v96, %v97
    %99 = vadd.xlane.f32.xlu0 %v98
    %v100 = vpop.xlane.xlu0 %99
    %v101 = vsel %vm95, %v87, 0.0
    %v102 = vsel %vm95, %v92, 0.0
    %v103 = vadd.f32 %v101, %v102
    %104 = vadd.xlane.f32.xlu0 %v103
    %v105 = vpop.xlane.xlu0 %104
    %v108 = vlaneseq
    %v109 = vand.u32 %v108, 127
    %v110 = vlaneseq
    %v111 = vshrl.u32 %v110, 7
    %v112 = vsub.s32 %v109, %v111
    %v113 = vrot.slane %v100, %v112
    %v114 = vlaneseq
    %v115 = vshrl.u32 %v114, 7
    %v116 = vsub.s32 %v109, %v115
    %v117 = vrot.slane %v105, %v116
    %vm118 = vcmask 1041409
    %v119 = vsel %vm118, %v117, %v113
    %v121 = vadd.f32 %v88, %v119
    %vm122 = vcmask 25600
    %123 = vst.msk [vmem:[#allocation2] sm:$0x3] %vm122, %v121
    // Predicated region
    $region50: #{tpu_custom_call.1} parent=1 // pred_check
      %p124 = pneg %p80
    $region51: #{tpu_custom_call.1} parent=1 // pred_check_branch
      %126 = sbr.rel (%p124) target = $region53
    $region52: #{tpu_custom_call.1} parent=1 // pred_region
      %v127 = vld [vmem:[#allocation2] sm:$0x3]
      %v128 = vmul.f32 %v127, 0.00390625
      %v129 = vld [vmem:[#allocation6] sm:$0xf]
      %v130 = vld [vmem:[%s2] sm:$0x1]
      %v132 = vlaneseq
      %v133 = vshrl.u32 %v132, 7
      %v134 = vsub.s32 0, %v133
      %v135 = vrot.slane %v130, %v134
      %vm137 = vcmask 31744
      %v139 = vsel %vm137, %v128, 0
      %v142 = vsel %vm95, %v129, 0
      %144 = vmatprep.subr.mxu0 0.0
      %145 = vmatpush1.msra.mxu0 0.0
      %146 = vmatprep.subr.mxu0 0.0
      %147 = vmatpush1.msra.mxu0 0.0
      %148 = vmatprep.subr.mxu0 0.0
      %149 = vmatpush1.msra.mxu0 0.0
      %150 = vmatprep.subr.mxu0 0.0
      %151 = vmatpush1.msra.mxu0 0.0
      %152 = vmatprep.subr.mxu0 0.0
      %153 = vmatpush1.msra.mxu0 0.0
      %154 = vmatprep.subr.mxu0 0.0
      %155 = vmatpush1.msra.mxu0 0.0
      %156 = vmatprep.subr.mxu0 0.0
      %157 = vmatpush1.msra.mxu0 0.0
      %158 = vmatprep.subr.mxu0 0.0
      %159 = vmatpush1.msra.mxu0 0.0
      %160 = vmatprep.subr.mxu0 0.0
      %161 = vmatpush1.msra.mxu0 0.0
      %162 = vmatprep.subr.mxu0 0.0
      %163 = vmatpush1.msra.mxu0 0.0
      %164 = vmatprep.subr.mxu0 0.0
      %165 = vmatpush1.msra.mxu0 0.0
      %166 = vmatprep.subr.mxu0 0.0
      %167 = vmatpush1.msra.mxu0 0.0
      %168 = vmatprep.subr.mxu0 0.0
      %169 = vmatpush1.msra.mxu0 0.0
      %170 = vmatprep.subr.mxu0 0.0
      %171 = vmatpush1.msra.mxu0 0.0
      %172 = vmatprep.subr.mxu0 0.0
      %173 = vmatpush1.msra.mxu0 0.0
      %174 = vmatprep.subr.mxu0 0.0
      %175 = vmatpush1.msra.mxu0 %v142
      %176 = vmatprep.subr.mxu0 0.0
      %177 = vmatpush2.msra.mxu0 0.0
      %178 = vmatprep.subr.mxu0 0.0
      %179 = vmatpush2.msra.mxu0 0.0
      %180 = vmatprep.subr.mxu0 0.0
      %181 = vmatpush2.msra.mxu0 0.0
      %182 = vmatprep.subr.mxu0 0.0
      %183 = vmatpush2.msra.mxu0 0.0
      %184 = vmatprep.subr.mxu0 0.0
      %185 = vmatpush2.msra.mxu0 0.0
      %186 = vmatprep.subr.mxu0 0.0
      %187 = vmatpush2.msra.mxu0 0.0
      %188 = vmatprep.subr.mxu0 0.0
      %189 = vmatpush2.msra.mxu0 0.0
      %190 = vmatprep.subr.mxu0 0.0
      %191 = vmatpush2.msra.mxu0 0.0
      %192 = vmatprep.subr.mxu0 0.0
      %193 = vmatpush2.msra.mxu0 0.0
      %194 = vmatprep.subr.mxu0 0.0
      %195 = vmatpush2.msra.mxu0 0.0
      %196 = vmatprep.subr.mxu0 0.0
      %197 = vmatpush2.msra.mxu0 0.0
      %198 = vmatprep.subr.mxu0 0.0
      %199 = vmatpush2.msra.mxu0 0.0
      %200 = vmatprep.subr.mxu0 0.0
      %201 = vmatpush2.msra.mxu0 0.0
      %202 = vmatprep.subr.mxu0 0.0
      %203 = vmatpush2.msra.mxu0 0.0
      %204 = vmatprep.subr.mxu0 0.0
      %205 = vmatpush2.msra.mxu0 0.0
      %206 = vmatprep.subr.mxu0 0.0
      %207 = vmatpush2.msra.mxu0 0.0
      %208 = vmatprep.mubr.f32.mxu0 0.0
      %209 = vmatmul.mubr.f32.gmra.mxu0 %v139
      %v210 = vpop.f32.mrf.mxu0
      %v211 = vadd.f32 %v135, %v210
      %v212 = vpop.f32.mrf.mxu0
      %213 = vdwg.mxu0
      %v214 = vmax.f32 %v211, 0.0
      %v215 = vld [vmem:[#allocation8] sm:$0xff]
      %v216 = vld [vmem:[#allocation8 + $0x8] sm:$0xff]
      %v217 = vld [vmem:[#allocation8 + $0x10] sm:$0xff]
      %v218 = vld [vmem:[#allocation8 + $0x18] sm:$0xff]
      %v219 = vld [vmem:[#allocation8 + $0x20] sm:$0xff]
      %v220 = vld [vmem:[#allocation8 + $0x28] sm:$0xff]
      %v221 = vld [vmem:[#allocation8 + $0x30] sm:$0xff]
      %v222 = vld [vmem:[#allocation8 + $0x38] sm:$0xff]
      %v223 = vld [vmem:[#allocation8 + $0x40] sm:$0xff]
      %v224 = vld [vmem:[#allocation8 + $0x48] sm:$0xff]
      %v225 = vld [vmem:[#allocation8 + $0x50] sm:$0xff]
      %v226 = vld [vmem:[#allocation8 + $0x58] sm:$0xff]
      %v227 = vld [vmem:[#allocation8 + $0x60] sm:$0xff]
      %v228 = vld [vmem:[#allocation8 + $0x68] sm:$0xff]
      %v229 = vld [vmem:[#allocation8 + $0x70] sm:$0xff]
      %v230 = vld [vmem:[#allocation8 + $0x78] sm:$0xff]
      %v231 = vld [vmem:[%s4] sm:$0x1]
      %v233 = vlaneseq
      %v234 = vshrl.u32 %v233, 7
      %v235 = vsub.s32 0, %v234
      %v236 = vrot.slane %v231, %v235
      %238 = vmatprep.subr.mxu0 0.0
      %239 = vmatpush1.msra.mxu0 %v230
      %240 = vmatprep.subr.mxu0 0.0
      %241 = vmatpush1.msra.mxu0 %v229
      %242 = vmatprep.subr.mxu0 0.0
      %243 = vmatpush1.msra.mxu0 %v228
      %244 = vmatprep.subr.mxu0 0.0
      %245 = vmatpush1.msra.mxu0 %v227
      %246 = vmatprep.subr.mxu0 0.0
      %247 = vmatpush1.msra.mxu0 %v226
      %248 = vmatprep.subr.mxu0 0.0
      %249 = vmatpush1.msra.mxu0 %v225
      %250 = vmatprep.subr.mxu0 0.0
      %251 = vmatpush1.msra.mxu0 %v224
      %252 = vmatprep.subr.mxu0 0.0
      %253 = vmatpush1.msra.mxu0 %v223
      %254 = vmatprep.subr.mxu0 0.0
      %255 = vmatpush1.msra.mxu0 %v222
      %256 = vmatprep.subr.mxu0 0.0
      %257 = vmatpush1.msra.mxu0 %v221
      %258 = vmatprep.subr.mxu0 0.0
      %259 = vmatpush1.msra.mxu0 %v220
      %260 = vmatprep.subr.mxu0 0.0
      %261 = vmatpush1.msra.mxu0 %v219
      %262 = vmatprep.subr.mxu0 0.0
      %263 = vmatpush1.msra.mxu0 %v218
      %264 = vmatprep.subr.mxu0 0.0
      %265 = vmatpush1.msra.mxu0 %v217
      %266 = vmatprep.subr.mxu0 0.0
      %267 = vmatpush1.msra.mxu0 %v216
      %268 = vmatprep.subr.mxu0 0.0
      %269 = vmatpush1.msra.mxu0 %v215
      %270 = vmatprep.subr.mxu0 0.0
      %271 = vmatpush2.msra.mxu0 0.0
      %272 = vmatprep.subr.mxu0 0.0
      %273 = vmatpush2.msra.mxu0 0.0
      %274 = vmatprep.subr.mxu0 0.0
      %275 = vmatpush2.msra.mxu0 0.0
      %276 = vmatprep.subr.mxu0 0.0
      %277 = vmatpush2.msra.mxu0 0.0
      %278 = vmatprep.subr.mxu0 0.0
      %279 = vmatpush2.msra.mxu0 0.0
      %280 = vmatprep.subr.mxu0 0.0
      %281 = vmatpush2.msra.mxu0 0.0
      %282 = vmatprep.subr.mxu0 0.0
      %283 = vmatpush2.msra.mxu0 0.0
      %284 = vmatprep.subr.mxu0 0.0
      %285 = vmatpush2.msra.mxu0 0.0
      %286 = vmatprep.subr.mxu0 0.0
      %287 = vmatpush2.msra.mxu0 0.0
      %288 = vmatprep.subr.mxu0 0.0
      %289 = vmatpush2.msra.mxu0 0.0
      %290 = vmatprep.subr.mxu0 0.0
      %291 = vmatpush2.msra.mxu0 0.0
      %292 = vmatprep.subr.mxu0 0.0
      %293 = vmatpush2.msra.mxu0 0.0
      %294 = vmatprep.subr.mxu0 0.0
      %295 = vmatpush2.msra.mxu0 0.0
      %296 = vmatprep.subr.mxu0 0.0
      %297 = vmatpush2.msra.mxu0 0.0
      %298 = vmatprep.subr.mxu0 0.0
      %299 = vmatpush2.msra.mxu0 0.0
      %300 = vmatprep.subr.mxu0 0.0
      %301 = vmatpush2.msra.mxu0 0.0
      %302 = vmatprep.mubr.f32.mxu0 0.0
      %303 = vmatmul.mubr.f32.gmra.mxu0 %v214
      %v304 = vpop.f32.mrf.mxu0
      %v305 = vadd.f32 %v236, %v304
      %v306 = vpop.f32.mrf.mxu0
      %307 = vdwg.mxu0
      %v308 = vmax.f32 %v305, 0.0
      %v309 = vld [vmem:[#allocation9] sm:$0xff]
      %v310 = vld [vmem:[#allocation9 + $0x8] sm:$0xff]
      %v311 = vld [vmem:[#allocation9 + $0x10] sm:$0xff]
      %v312 = vld [vmem:[#allocation9 + $0x18] sm:$0xff]
      %v313 = vld [vmem:[#allocation9 + $0x20] sm:$0xff]
      %v314 = vld [vmem:[#allocation9 + $0x28] sm:$0xff]
      %v315 = vld [vmem:[#allocation9 + $0x30] sm:$0xff]
      %v316 = vld [vmem:[#allocation9 + $0x38] sm:$0xff]
      %v317 = vld [vmem:[#allocation9 + $0x40] sm:$0xff]
      %v318 = vld [vmem:[#allocation9 + $0x48] sm:$0xff]
      %v319 = vld [vmem:[#allocation9 + $0x50] sm:$0xff]
      %v320 = vld [vmem:[#allocation9 + $0x58] sm:$0xff]
      %v321 = vld [vmem:[#allocation9 + $0x60] sm:$0xff]
      %v322 = vld [vmem:[#allocation9 + $0x68] sm:$0xff]
      %v323 = vld [vmem:[#allocation9 + $0x70] sm:$0xff]
      %v324 = vld [vmem:[#allocation9 + $0x78] sm:$0xff]
      %v325 = vld [vmem:[%s6] sm:$0x1]
      %v327 = vlaneseq
      %v328 = vshrl.u32 %v327, 7
      %v329 = vsub.s32 0, %v328
      %v330 = vrot.slane %v325, %v329
      %332 = vmatprep.subr.mxu0 0.0
      %333 = vmatpush1.msra.mxu0 %v324
      %334 = vmatprep.subr.mxu0 0.0
      %335 = vmatpush1.msra.mxu0 %v323
      %336 = vmatprep.subr.mxu0 0.0
      %337 = vmatpush1.msra.mxu0 %v322
      %338 = vmatprep.subr.mxu0 0.0
      %339 = vmatpush1.msra.mxu0 %v321
      %340 = vmatprep.subr.mxu0 0.0
      %341 = vmatpush1.msra.mxu0 %v320
      %342 = vmatprep.subr.mxu0 0.0
      %343 = vmatpush1.msra.mxu0 %v319
      %344 = vmatprep.subr.mxu0 0.0
      %345 = vmatpush1.msra.mxu0 %v318
      %346 = vmatprep.subr.mxu0 0.0
      %347 = vmatpush1.msra.mxu0 %v317
      %348 = vmatprep.subr.mxu0 0.0
      %349 = vmatpush1.msra.mxu0 %v316
      %350 = vmatprep.subr.mxu0 0.0
      %351 = vmatpush1.msra.mxu0 %v315
      %352 = vmatprep.subr.mxu0 0.0
      %353 = vmatpush1.msra.mxu0 %v314
      %354 = vmatprep.subr.mxu0 0.0
      %355 = vmatpush1.msra.mxu0 %v313
      %356 = vmatprep.subr.mxu0 0.0
      %357 = vmatpush1.msra.mxu0 %v312
      %358 = vmatprep.subr.mxu0 0.0
      %359 = vmatpush1.msra.mxu0 %v311
      %360 = vmatprep.subr.mxu0 0.0
      %361 = vmatpush1.msra.mxu0 %v310
      %362 = vmatprep.subr.mxu0 0.0
      %363 = vmatpush1.msra.mxu0 %v309
      %364 = vmatprep.subr.mxu0 0.0
      %365 = vmatpush2.msra.mxu0 0.0
      %366 = vmatprep.subr.mxu0 0.0
      %367 = vmatpush2.msra.mxu0 0.0
      %368 = vmatprep.subr.mxu0 0.0
      %369 = vmatpush2.msra.mxu0 0.0
      %370 = vmatprep.subr.mxu0 0.0
      %371 = vmatpush2.msra.mxu0 0.0
      %372 = vmatprep.subr.mxu0 0.0
      %373 = vmatpush2.msra.mxu0 0.0
      %374 = vmatprep.subr.mxu0 0.0
      %375 = vmatpush2.msra.mxu0 0.0
      %376 = vmatprep.subr.mxu0 0.0
      %377 = vmatpush2.msra.mxu0 0.0
      %378 = vmatprep.subr.mxu0 0.0
      %379 = vmatpush2.msra.mxu0 0.0
      %380 = vmatprep.subr.mxu0 0.0
      %381 = vmatpush2.msra.mxu0 0.0
      %382 = vmatprep.subr.mxu0 0.0
      %383 = vmatpush2.msra.mxu0 0.0
      %384 = vmatprep.subr.mxu0 0.0
      %385 = vmatpush2.msra.mxu0 0.0
      %386 = vmatprep.subr.mxu0 0.0
      %387 = vmatpush2.msra.mxu0 0.0
      %388 = vmatprep.subr.mxu0 0.0
      %389 = vmatpush2.msra.mxu0 0.0
      %390 = vmatprep.subr.mxu0 0.0
      %391 = vmatpush2.msra.mxu0 0.0
      %392 = vmatprep.subr.mxu0 0.0
      %393 = vmatpush2.msra.mxu0 0.0
      %394 = vmatprep.subr.mxu0 0.0
      %395 = vmatpush2.msra.mxu0 0.0
      %396 = vmatprep.mubr.f32.mxu0 0.0
      %397 = vmatmul.mubr.f32.gmra.mxu0 %v308
      %v398 = vpop.f32.mrf.mxu0
      %v399 = vadd.f32 %v330, %v398
      %v400 = vpop.f32.mrf.mxu0
      %401 = vdwg.mxu0
      %402 = vst [vmem:[#allocation11] sm:$0x3] %v399
    $region53: #{tpu_custom_call.1} parent=1 // pred_fallthru
      _
    // Predicated region
    $region54: #{tpu_custom_call.1} parent=1 // pred_check
      _
    $region55: #{tpu_custom_call.1} parent=1 // pred_check_branch
      %404 = sbr.rel (0) target = $region57
    $region56: #{tpu_custom_call.1} parent=1 // pred_region
      %s406 = ssub.s32 32, 32
      %407 = vsyncadd [#allocation5], %s406
      %s409 = sshll.u32 [#allocation11], 4
      %s410 = int_to_ptr.vmem [resolvable:$true] %s409
      %412 = dma.vmem_to_hbm [thread:$0]  %s410, 32, %s7, [#allocation5]
    $region57: #{tpu_custom_call.1} parent=1 // pred_fallthru
      _
    // Predicated region
    $region58: #{tpu_custom_call.1} parent=1 // pred_check
      _
    $region59: #{tpu_custom_call.1} parent=1 // pred_check_branch
      %414 = sbr.rel (0) target = $region61
    $region60: #{tpu_custom_call.1} parent=1 // pred_region
      %415 = dma.done [#allocation5], 32
    $region61: #{tpu_custom_call.1} parent=1 // pred_fallthru
      _
    %416 = vsyncpa [#allocation4], 1
    %417 = vsyncpa [#allocation7], 1
    %418 = vsyncpa [#allocation10], 1
    %419 = vsyncpa [#allocation5], 1

</llo_original>
